<compile_context>
chip_gen: v7x
topology: tpu7x:2x2x1
jax: 0.10.0
libtpu: 0.0.40
codegen_flags: <defaults>
</compile_context>

<pallas_src>
import jax
import jax.numpy as jnp
from jax import lax
from jax.experimental import pallas as pl
from jax.experimental.pallas import tpu as pltpu


_NEG_BIG = -1e30  # acts as -inf for the softmax but avoids inf-inf NaN corner cases


def _attention_kernel(nrows_ref, idx_ref, emb_ref, w1_ref, b1_ref, w2_ref, b2_ref,
                      out_ref, m_ref, l_ref, acc_ref):
    """One N-tile step of the online segment-softmax attention.

    nrows_ref: [1] int32 (SMEM)  number of real (non-padded) rows
    idx_ref  : [1, TN] int32     group id per row (== G for padded rows)
    emb_ref  : [TN, D]           embeddings tile (bf16 or f32)
    w1_ref   : [D, D], b1_ref: [1, D]   Linear1 (weight pre-transposed, bias f32)
    w2_ref   : [D, D], b2_ref: [1, D]   Linear2
    out_ref  : [G, D]  f32       result (written on last tile only)
    m_ref    : [1, D]  f32       running per-feature max (softmax stabilizer)
    l_ref    : [G, D]  f32       running per-group sum of exp(x2 - m)
    acc_ref  : [G, D]  f32       running per-group sum of exp(x2 - m) * emb
    """
    n = pl.program_id(0)

    @pl.when(n == 0)
    def _init():
        m_ref[...] = jnp.full(m_ref.shape, -jnp.inf, dtype=m_ref.dtype)
        l_ref[...] = jnp.zeros(l_ref.shape, dtype=l_ref.dtype)
        acc_ref[...] = jnp.zeros(acc_ref.shape, dtype=acc_ref.dtype)

    emb = emb_ref[...]                         # [TN, D] compute dtype
    tn, dp = emb.shape
    g = out_ref.shape[0]
    cdt = emb.dtype

    # ---- MLP: relu(Linear1) -> Linear2 (bf16 MXU inputs, f32 accumulation) ----
    h1 = jnp.dot(emb, w1_ref[...], preferred_element_type=jnp.float32) + b1_ref[...]
    h1 = jnp.maximum(h1, 0.0)
    x2 = (jnp.dot(h1.astype(cdt), w2_ref[...],
                  preferred_element_type=jnp.float32) + b2_ref[...])        # [TN, D] f32

    # ---- mask rows past the real row count (padded tail of the last tile) ----
    row = lax.broadcasted_iota(jnp.int32, x2.shape, 0) + n * tn
    x2 = jnp.where(row < nrows_ref[0], x2, _NEG_BIG)

    # ---- online softmax stabilizer (running per-feature max + rescale) ----
    m_old = m_ref[...]                                        # [1, D]
    m_new = jnp.maximum(m_old, jnp.max(x2, axis=0, keepdims=True))
    scale = jnp.exp(m_old - m_new)                            # [1, D]; 0 on first tile
    ex = jnp.exp(x2 - m_new)                                  # [TN, D] f32; 0 for padded rows

    # ---- one-hot membership built directly in [G, TN] (no transpose); 0/1 exact in bf16
    onehot = (lax.broadcasted_iota(jnp.int32, (g, tn), 0) == idx_ref[...]).astype(cdt)

    # ---- fused scatter reduction: a single [G,TN] x [TN,2D] MXU matmul ----
    cat = jnp.concatenate([ex, ex * emb.astype(jnp.float32)], axis=1).astype(cdt)
    red = jnp.dot(onehot, cat, preferred_element_type=jnp.float32)   # [G, 2D] f32
    l_tile = red[:, :dp]
    a_tile = red[:, dp:]

    l_ref[...] = l_ref[...] * scale + l_tile
    acc_ref[...] = acc_ref[...] * scale + a_tile
    m_ref[...] = m_new

    # ---- finalize: group-level normalization; empty groups stay exactly 0 ----
    @pl.when(n == pl.num_programs(0) - 1)
    def _done():
        l = l_ref[...]
        denom = jnp.where(l > 0.0, l, 1.0)
        out_ref[...] = (acc_ref[...] / denom).astype(out_ref.dtype)


def _round_up(x, m):
    return ((x + m - 1) // m) * m


def _vmem_limit_bytes(tile_n, dp, g, itemsize):
    """Request only what the kernel footprint needs, with headroom for the pipeline."""
    try:
        physical = int(pltpu.get_tpu_info().vmem_capacity_bytes)
    except Exception:
        physical = 64 * 1024 * 1024          # conservative: v7x per-core VMEM
    cap = (physical * 3) // 4                # keep 25% headroom
    est = (
        2 * tile_n * dp * itemsize           # double-buffered embeddings tile
        + 2 * 2 * dp * dp * itemsize         # W1/W2 (assume double-buffered blocks)
        + 4 * 2 * dp * 4                     # biases
        + 2 * 2 * tile_n * 4                 # idx tile
        + 2 * g * dp * 4                     # output block
        + (1 + 2 * g) * dp * 4               # m / l / acc scratch
        + 12 * tile_n * dp * 4               # kernel intermediates (h1, x2, ex, cat, ...)
        + (2 << 20)                          # slack
    )
    return int(min(max(est, 32 * 1024 * 1024), cap))


def attention_forward(embeddings, idx, dim_size, w1_t, b1, w2_t, b2,
                      *, tile_n=512, mxu_dtype=jnp.bfloat16):
    """Pallas TPU forward of the PyTorch `Attention` module.

    embeddings: [N, D] f32, idx: [N] int, weights pre-transposed to [D_in, D_out]
    so that x @ w_t == x @ W.T (PyTorch Linear convention), biases [D].
    Returns [dim_size, D] f32.  mxu_dtype=jnp.bfloat16 (default) feeds the MXU
    bf16 everywhere; softmax math and accumulation stay f32.  mxu_dtype=None
    keeps full f32 matmuls.
    """
    N, D = embeddings.shape
    G = int(dim_size)
    f32 = jnp.float32
    compute_dtype = f32 if mxu_dtype is None else mxu_dtype

    # Lane-dense feature dim; row tiles in multiples of 128 (MXU- and
    # sublane-pack friendly for every compute dtype), clamped so tiny problems
    # don't over-pad.
    Dp = max(_round_up(D, 128), 128)
    tile_n = max(128, _round_up(int(tile_n), 128))
    tile_n = min(tile_n, _round_up(max(N, 1), 128))
    Np = _round_up(max(N, 1), tile_n)
    num_tiles = Np // tile_n

    # Embeddings: cast to the MXU dtype; only materialize a padded HBM copy when
    # the shapes actually require it.
    # TODO(synk): for very large N, stream the ragged tail without any padded
    # copy (the in-kernel row mask already makes garbage tail rows harmless).
    if Np != N or Dp != D:
        emb_p = jnp.zeros((Np, Dp), compute_dtype).at[:N, :D].set(
            embeddings.astype(compute_dtype))
    else:
        emb_p = embeddings.astype(compute_dtype)
    idx_p = jnp.full((1, Np), G, jnp.int32).at[0, :N].set(idx.astype(jnp.int32))

    if Dp != D:
        w1_p = jnp.zeros((Dp, Dp), f32).at[:D, :D].set(w1_t.astype(f32)).astype(compute_dtype)
        w2_p = jnp.zeros((Dp, Dp), f32).at[:D, :D].set(w2_t.astype(f32)).astype(compute_dtype)
    else:
        w1_p = w1_t.astype(compute_dtype)
        w2_p = w2_t.astype(compute_dtype)
    b1_p = jnp.zeros((1, Dp), f32).at[0, :D].set(b1.astype(f32))
    b2_p = jnp.zeros((1, Dp), f32).at[0, :D].set(b2.astype(f32))
    nrows = jnp.array([N], jnp.int32)

    itemsize = jnp.dtype(compute_dtype).itemsize
    cost = pl.CostEstimate(
        flops=int(2 * Np * Dp * Dp * 2 + 2 * Np * G * (2 * Dp)),
        transcendentals=int(Np * Dp + num_tiles * Dp),
        bytes_accessed=int(Np * Dp * itemsize + Np * 4
                           + 2 * Dp * Dp * itemsize + 2 * Dp * 4 + G * Dp * 4),
    )

    out_p = pl.pallas_call(
        _attention_kernel,
        out_shape=jax.ShapeDtypeStruct((G, Dp), jnp.float32),
        grid_spec=pltpu.PrefetchScalarGridSpec(
            num_scalar_prefetch=1,              # nrows -> SMEM
            grid=(num_tiles,),
            in_specs=[
                pl.BlockSpec((1, tile_n), lambda n, nr: (0, n)),     # idx tile
                pl.BlockSpec((tile_n, Dp), lambda n, nr: (n, 0)),    # embeddings tile
                pl.BlockSpec((Dp, Dp), lambda n, nr: (0, 0)),        # W1^T (resident)
                pl.BlockSpec((1, Dp), lambda n, nr: (0, 0)),         # b1   (resident)
                pl.BlockSpec((Dp, Dp), lambda n, nr: (0, 0)),        # W2^T (resident)
                pl.BlockSpec((1, Dp), lambda n, nr: (0, 0)),         # b2   (resident)
            ],
            out_specs=pl.BlockSpec((G, Dp), lambda n, nr: (0, 0)),   # resident output
            scratch_shapes=[
                pltpu.VMEM((1, Dp), jnp.float32),   # running max m
                pltpu.VMEM((G, Dp), jnp.float32),   # running denominator l
                pltpu.VMEM((G, Dp), jnp.float32),   # running numerator acc
            ],
        ),
        compiler_params=pltpu.CompilerParams(
            dimension_semantics=("arbitrary",),      # N axis carries accumulators
            vmem_limit_bytes=_vmem_limit_bytes(tile_n, Dp, G, itemsize),
        ),
        cost_estimate=cost,
    )(nrows, idx_p, emb_p, w1_p, b1_p, w2_p, b2_p)

    return out_p[:, :D]
    # TODO(synk): v7x — shard the feature axis (W2 columns / b2 / m,l,acc / out)
    # over the two TensorCores via a leading "parallel" grid axis, and
    # single-buffer the constant-index weight blocks (pipeline_mode=pl.Buffered(1)).


def _reference(embeddings, idx, dim_size, w1_t, b1, w2_t, b2):
    """Pure-JAX reference of the scatter_softmax / scatter_sum semantics."""
    h1 = jnp.maximum(embeddings @ w1_t + b1, 0.0)
    x2 = h1 @ w2_t + b2
    gmax = jax.ops.segment_max(x2, idx, num_segments=dim_size)
    ex = jnp.exp(x2 - gmax[idx])
    gsum = jax.ops.segment_sum(ex, idx, num_segments=dim_size)
    attn = ex / gsum[idx]
    return jax.ops.segment_sum(attn * embeddings, idx, num_segments=dim_size)


if __name__ == "__main__":
    key = jax.random.PRNGKey(0)
    # Small shapes: N deliberately NOT a tile multiple (exercises the row mask),
    # lane-dense feature dim D, G groups.
    N, D, dim_size = 250, 128, 8

    k_emb, k_idx, k_w1, k_b1, k_w2, k_b2 = jax.random.split(key, 6)

    embeddings = jax.random.normal(k_emb, (N, D), dtype=jnp.float32)
    idx = jax.random.randint(k_idx, (N,), 0, dim_size, dtype=jnp.int32)

    # Xavier-uniform weights (fan_in = fan_out = D), PyTorch-default uniform biases.
    limit_w = (6.0 / (D + D)) ** 0.5
    limit_b = 1.0 / (D ** 0.5)
    w1 = jax.random.uniform(k_w1, (D, D), minval=-limit_w, maxval=limit_w, dtype=jnp.float32)
    b1 = jax.random.uniform(k_b1, (D,), minval=-limit_b, maxval=limit_b, dtype=jnp.float32)
    w2 = jax.random.uniform(k_w2, (D, D), minval=-limit_w, maxval=limit_w, dtype=jnp.float32)
    b2 = jax.random.uniform(k_b2, (D,), minval=-limit_b, maxval=limit_b, dtype=jnp.float32)

    # Pre-transpose so that x @ w_t == x @ W.T (PyTorch Linear convention).
    w1_t = w1.T
    w2_t = w2.T

    ref = _reference(embeddings, idx, dim_size, w1_t, b1, w2_t, b2)

    # Default fast path: bf16 MXU inputs, large row tile (bf16-appropriate tolerance).
    out_bf16 = attention_forward(embeddings, idx, dim_size, w1_t, b1, w2_t, b2)
    out_bf16 = jax.block_until_ready(out_bf16)
    assert out_bf16.shape == (dim_size, D)
    assert bool(jnp.allclose(out_bf16, ref, atol=2e-2, rtol=2e-2)), (
        f"bf16 path max abs diff = {float(jnp.max(jnp.abs(out_bf16 - ref)))}")

    # Full-f32 path with small tiles: exercises the multi-tile online
    # accumulation and padded-tail masking at tight tolerance.
    out_f32 = attention_forward(embeddings, idx, dim_size, w1_t, b1, w2_t, b2,
                                tile_n=128, mxu_dtype=None)
    out_f32 = jax.block_until_ready(out_f32)
    assert bool(jnp.allclose(out_f32, ref, atol=1e-3, rtol=1e-3)), (
        f"f32 path max abs diff = {float(jnp.max(jnp.abs(out_f32 - ref)))}")

    print("KERNEL_OK")
</pallas_src>

<mosaic_0001>
module attributes {stable_mosaic.version = 11 : i64} {
  func.func @_attention_kernel(%arg0: i32, %arg1: memref<1xi32, #tpu.memory_space<smem>>, %arg2: memref<1x256xi32, #tpu.memory_space<vmem>>, %arg3: memref<256x128xbf16, #tpu.memory_space<vmem>>, %arg4: memref<128x128xbf16, #tpu.memory_space<vmem>>, %arg5: memref<1x128xf32, #tpu.memory_space<vmem>>, %arg6: memref<128x128xbf16, #tpu.memory_space<vmem>>, %arg7: memref<1x128xf32, #tpu.memory_space<vmem>>, %arg8: memref<8x128xf32, #tpu.memory_space<vmem>>, %arg9: memref<1x128xf32, #tpu.memory_space<vmem>>, %arg10: memref<8x128xf32, #tpu.memory_space<vmem>>, %arg11: memref<8x128xf32, #tpu.memory_space<vmem>>) attributes {dimension_semantics = [#tpu.dimension_semantics<arbitrary>], iteration_bounds = array<i64: 1>, scalar_prefetch = 1 : i64, scratch_operands = 3 : i64, tpu.core_type = #tpu.core_type<tc>, window_params = [{transform_indices = @transform_0, window_bounds = array<i64: 1, 256>}, {transform_indices = @transform_1, window_bounds = array<i64: 256, 128>}, {pipeline_mode = #tpu.pipeline_mode<synchronous>, transform_indices = @transform_2, window_bounds = array<i64: 128, 128>}, {pipeline_mode = #tpu.pipeline_mode<synchronous>, transform_indices = @transform_3, window_bounds = array<i64: 1, 128>}, {pipeline_mode = #tpu.pipeline_mode<synchronous>, transform_indices = @transform_4, window_bounds = array<i64: 128, 128>}, {pipeline_mode = #tpu.pipeline_mode<synchronous>, transform_indices = @transform_5, window_bounds = array<i64: 1, 128>}, {pipeline_mode = #tpu.pipeline_mode<synchronous>, transform_indices = @transform_6, window_bounds = array<i64: 8, 128>}]} {
    %c0_i32 = arith.constant 0 : i32
    %0 = arith.cmpi eq, %arg0, %c0_i32 : i32
    %1 = arith.extui %0 : i1 to i32
    %c0_i32_0 = arith.constant 0 : i32
    %2 = arith.cmpi ne, %1, %c0_i32_0 : i32
    scf.if %2 {
      %cst_32 = arith.constant 0xFF800000 : f32
      %63 = vector.broadcast %cst_32 : f32 to vector<1x128xf32>
      %c0_33 = arith.constant 0 : index
      %c0_34 = arith.constant 0 : index
      %64 = vector.load %arg9[%c0_33, %c0_34] : memref<1x128xf32, #tpu.memory_space<vmem>>, vector<1x128xf32>
      tpu.vector_store %arg9[%c0_33, %c0_34], %63 {strides = array<i32>} : memref<1x128xf32, #tpu.memory_space<vmem>>, vector<1x128xf32>,
      %cst_35 = arith.constant 0.000000e+00 : f32
      %65 = vector.broadcast %cst_35 : f32 to vector<8x128xf32>
      %c0_36 = arith.constant 0 : index
      %c0_37 = arith.constant 0 : index
      %66 = vector.load %arg10[%c0_36, %c0_37] : memref<8x128xf32, #tpu.memory_space<vmem>>, vector<8x128xf32>
      tpu.vector_store %arg10[%c0_36, %c0_37], %65 {strides = array<i32>} : memref<8x128xf32, #tpu.memory_space<vmem>>, vector<8x128xf32>,
      %cst_38 = arith.constant 0.000000e+00 : f32
      %67 = vector.broadcast %cst_38 : f32 to vector<8x128xf32>
      %c0_39 = arith.constant 0 : index
      %c0_40 = arith.constant 0 : index
      %68 = vector.load %arg11[%c0_39, %c0_40] : memref<8x128xf32, #tpu.memory_space<vmem>>, vector<8x128xf32>
      tpu.vector_store %arg11[%c0_39, %c0_40], %67 {strides = array<i32>} : memref<8x128xf32, #tpu.memory_space<vmem>>, vector<8x128xf32>,
    } else {
    }
    %c0 = arith.constant 0 : index
    %c0_1 = arith.constant 0 : index
    %3 = vector.load %arg3[%c0, %c0_1] : memref<256x128xbf16, #tpu.memory_space<vmem>>, vector<256x128xbf16>
    %c0_2 = arith.constant 0 : index
    %c0_3 = arith.constant 0 : index
    %4 = vector.load %arg4[%c0_2, %c0_3] : memref<128x128xbf16, #tpu.memory_space<vmem>>, vector<128x128xbf16>
    %cst = arith.constant dense<0.000000e+00> : vector<256x128xf32>
    %5 = tpu.matmul %3, %4, %cst {dimension_numbers = #tpu.dot_dimension_numbers<[1], [0], [0], [1], [0, 0, 1, 1], [], []>} : vector<256x128xbf16>, vector<128x128xbf16>, vector<256x128xf32> -> vector<256x128xf32>
    %c0_4 = arith.constant 0 : index
    %c0_5 = arith.constant 0 : index
    %6 = vector.load %arg5[%c0_4, %c0_5] : memref<1x128xf32, #tpu.memory_space<vmem>>, vector<1x128xf32>
    %7 = vector.broadcast %6 : vector<1x128xf32> to vector<256x128xf32>
    %8 = arith.addf %5, %7 : vector<256x128xf32>
    %cst_6 = arith.constant 0.000000e+00 : f32
    %9 = vector.broadcast %cst_6 : f32 to vector<256x128xf32>
    %10 = arith.maximumf %8, %9 : vector<256x128xf32>
    %11 = arith.truncf %10 : vector<256x128xf32> to vector<256x128xbf16>
    %c0_7 = arith.constant 0 : index
    %c0_8 = arith.constant 0 : index
    %12 = vector.load %arg6[%c0_7, %c0_8] : memref<128x128xbf16, #tpu.memory_space<vmem>>, vector<128x128xbf16>
    %cst_9 = arith.constant dense<0.000000e+00> : vector<256x128xf32>
    %13 = tpu.matmul %11, %12, %cst_9 {dimension_numbers = #tpu.dot_dimension_numbers<[1], [0], [0], [1], [0, 0, 1, 1], [], []>} : vector<256x128xbf16>, vector<128x128xbf16>, vector<256x128xf32> -> vector<256x128xf32>
    %c0_10 = arith.constant 0 : index
    %c0_11 = arith.constant 0 : index
    %14 = vector.load %arg7[%c0_10, %c0_11] : memref<1x128xf32, #tpu.memory_space<vmem>>, vector<1x128xf32>
    %15 = vector.broadcast %14 : vector<1x128xf32> to vector<256x128xf32>
    %16 = arith.addf %13, %15 : vector<256x128xf32>
    %17 = tpu.iota {dimensions = array<i32: 0>} : vector<256x128xi32>
    %c256_i32 = arith.constant 256 : i32
    %18 = arith.muli %arg0, %c256_i32 : i32
    %19 = vector.broadcast %18 : i32 to vector<256x128xi32>
    %20 = arith.addi %17, %19 : vector<256x128xi32>
    %c0_12 = arith.constant 0 : index
    %21 = memref.load %arg1[%c0_12] : memref<1xi32, #tpu.memory_space<smem>>
    %22 = vector.broadcast %21 : i32 to vector<256x128xi32>
    %23 = arith.cmpi slt, %20, %22 : vector<256x128xi32>
    %cst_13 = arith.constant -1.000000e+30 : f32
    %24 = vector.broadcast %cst_13 : f32 to vector<256x128xf32>
    %25 = arith.select %23, %16, %24 : vector<256x128xi1>, vector<256x128xf32>
    %c0_14 = arith.constant 0 : index
    %c0_15 = arith.constant 0 : index
    %26 = vector.load %arg9[%c0_14, %c0_15] : memref<1x128xf32, #tpu.memory_space<vmem>>, vector<1x128xf32>
    %cst_16 = arith.constant dense<0xFF800000> : vector<128xf32>
    %27 = vector.multi_reduction <maximumf>, %25, %cst_16 [0] : vector<256x128xf32> to vector<128xf32>
    %28 = vector.shape_cast %27 : vector<128xf32> to vector<1x128xf32>
    %29 = arith.maximumf %26, %28 : vector<1x128xf32>
    %30 = arith.subf %26, %29 : vector<1x128xf32>
    %31 = math.exp %30 : vector<1x128xf32>
    %32 = vector.broadcast %29 : vector<1x128xf32> to vector<256x128xf32>
    %33 = arith.subf %25, %32 : vector<256x128xf32>
    %34 = math.exp %33 : vector<256x128xf32>
    %35 = tpu.iota {dimensions = array<i32: 0>} : vector<8x256xi32>
    %c0_17 = arith.constant 0 : index
    %c0_18 = arith.constant 0 : index
    %36 = vector.load %arg2[%c0_17, %c0_18] : memref<1x256xi32, #tpu.memory_space<vmem>>, vector<1x256xi32>
    %37 = vector.broadcast %36 : vector<1x256xi32> to vector<8x256xi32>
    %38 = arith.cmpi eq, %35, %37 : vector<8x256xi32>
    %39 = arith.extui %38 : vector<8x256xi1> to vector<8x256xi32>
    %40 = arith.sitofp %39 : vector<8x256xi32> to vector<8x256xf32>
    %41 = arith.truncf %40 : vector<8x256xf32> to vector<8x256xbf16>
    %42 = arith.extf %3 : vector<256x128xbf16> to vector<256x128xf32>
    %43 = arith.mulf %34, %42 : vector<256x128xf32>
    %44 = tpu.concatenate %34, %43 in 1 : vector<256x128xf32>, vector<256x128xf32> -> vector<256x256xf32>
    %45 = arith.truncf %44 : vector<256x256xf32> to vector<256x256xbf16>
    %cst_19 = arith.constant dense<0.000000e+00> : vector<8x256xf32>
    %46 = tpu.matmul %41, %45, %cst_19 {dimension_numbers = #tpu.dot_dimension_numbers<[1], [0], [0], [1], [0, 0, 1, 1], [], []>} : vector<8x256xbf16>, vector<256x256xbf16>, vector<8x256xf32> -> vector<8x256xf32>
    %47 = vector.extract_strided_slice %46 {offsets = [0, 0], sizes = [8, 128], strides = [1, 1]} : vector<8x256xf32> to vector<8x128xf32>
    %48 = vector.extract_strided_slice %46 {offsets = [0, 128], sizes = [8, 128], strides = [1, 1]} : vector<8x256xf32> to vector<8x128xf32>
    %c0_20 = arith.constant 0 : index
    %c0_21 = arith.constant 0 : index
    %49 = vector.load %arg10[%c0_20, %c0_21] : memref<8x128xf32, #tpu.memory_space<vmem>>, vector<8x128xf32>
    %50 = vector.broadcast %31 : vector<1x128xf32> to vector<8x128xf32>
    %51 = arith.mulf %49, %50 : vector<8x128xf32>
    %52 = arith.addf %51, %47 : vector<8x128xf32>
    %c0_22 = arith.constant 0 : index
    %c0_23 = arith.constant 0 : index
    %53 = vector.load %arg10[%c0_22, %c0_23] : memref<8x128xf32, #tpu.memory_space<vmem>>, vector<8x128xf32>
    tpu.vector_store %arg10[%c0_22, %c0_23], %52 {strides = array<i32>} : memref<8x128xf32, #tpu.memory_space<vmem>>, vector<8x128xf32>,
    %c0_24 = arith.constant 0 : index
    %c0_25 = arith.constant 0 : index
    %54 = vector.load %arg11[%c0_24, %c0_25] : memref<8x128xf32, #tpu.memory_space<vmem>>, vector<8x128xf32>
    %55 = vector.broadcast %31 : vector<1x128xf32> to vector<8x128xf32>
    %56 = arith.mulf %54, %55 : vector<8x128xf32>
    %57 = arith.addf %56, %48 : vector<8x128xf32>
    %c0_26 = arith.constant 0 : index
    %c0_27 = arith.constant 0 : index
    %58 = vector.load %arg11[%c0_26, %c0_27] : memref<8x128xf32, #tpu.memory_space<vmem>>, vector<8x128xf32>
    tpu.vector_store %arg11[%c0_26, %c0_27], %57 {strides = array<i32>} : memref<8x128xf32, #tpu.memory_space<vmem>>, vector<8x128xf32>,
    %c0_28 = arith.constant 0 : index
    %c0_29 = arith.constant 0 : index
    %59 = vector.load %arg9[%c0_28, %c0_29] : memref<1x128xf32, #tpu.memory_space<vmem>>, vector<1x128xf32>
    tpu.vector_store %arg9[%c0_28, %c0_29], %29 {strides = array<i32>} : memref<1x128xf32, #tpu.memory_space<vmem>>, vector<1x128xf32>,
    %c0_i32_30 = arith.constant 0 : i32
    %60 = arith.cmpi eq, %arg0, %c0_i32_30 : i32
    %61 = arith.extui %60 : i1 to i32
    %c0_i32_31 = arith.constant 0 : i32
    %62 = arith.cmpi ne, %61, %c0_i32_31 : i32
    scf.if %62 {
      %c0_32 = arith.constant 0 : index
      %c0_33 = arith.constant 0 : index
      %63 = vector.load %arg10[%c0_32, %c0_33] : memref<8x128xf32, #tpu.memory_space<vmem>>, vector<8x128xf32>
      %cst_34 = arith.constant 0.000000e+00 : f32
      %64 = vector.broadcast %cst_34 : f32 to vector<8x128xf32>
      %65 = arith.cmpf ogt, %63, %64 : vector<8x128xf32>
      %cst_35 = arith.constant 1.000000e+00 : f32
      %66 = vector.broadcast %cst_35 : f32 to vector<8x128xf32>
      %67 = arith.select %65, %63, %66 : vector<8x128xi1>, vector<8x128xf32>
      %c0_36 = arith.constant 0 : index
      %c0_37 = arith.constant 0 : index
      %68 = vector.load %arg11[%c0_36, %c0_37] : memref<8x128xf32, #tpu.memory_space<vmem>>, vector<8x128xf32>
      %69 = arith.divf %68, %67 : vector<8x128xf32>
      %c0_38 = arith.constant 0 : index
      %c0_39 = arith.constant 0 : index
      %70 = vector.load %arg8[%c0_38, %c0_39] : memref<8x128xf32, #tpu.memory_space<vmem>>, vector<8x128xf32>
      tpu.vector_store %arg8[%c0_38, %c0_39], %69 {strides = array<i32>} : memref<8x128xf32, #tpu.memory_space<vmem>>, vector<8x128xf32>,
    } else {
    }
    return
  }
  func.func @transform_0(%arg0: i32, %arg1: memref<1xi32, #tpu.memory_space<smem>>) -> (i32, i32) {
    %c0_i32 = arith.constant 0 : i32
    %c0_i32_0 = arith.constant 0 : i32
    return %c0_i32, %arg0 : i32, i32
  }
  func.func @transform_1(%arg0: i32, %arg1: memref<1xi32, #tpu.memory_space<smem>>) -> (i32, i32) {
    %c0_i32 = arith.constant 0 : i32
    %c0_i32_0 = arith.constant 0 : i32
    return %arg0, %c0_i32 : i32, i32
  }
  func.func @transform_2(%arg0: i32, %arg1: memref<1xi32, #tpu.memory_space<smem>>) -> (i32, i32) {
    %c0_i32 = arith.constant 0 : i32
    %c0_i32_0 = arith.constant 0 : i32
    %c0_i32_1 = arith.constant 0 : i32
    return %c0_i32, %c0_i32_0 : i32, i32
  }
  func.func @transform_3(%arg0: i32, %arg1: memref<1xi32, #tpu.memory_space<smem>>) -> (i32, i32) {
    %c0_i32 = arith.constant 0 : i32
    %c0_i32_0 = arith.constant 0 : i32
    %c0_i32_1 = arith.constant 0 : i32
    return %c0_i32, %c0_i32_0 : i32, i32
  }
  func.func @transform_4(%arg0: i32, %arg1: memref<1xi32, #tpu.memory_space<smem>>) -> (i32, i32) {
    %c0_i32 = arith.constant 0 : i32
    %c0_i32_0 = arith.constant 0 : i32
    %c0_i32_1 = arith.constant 0 : i32
    return %c0_i32, %c0_i32_0 : i32, i32
  }
  func.func @transform_5(%arg0: i32, %arg1: memref<1xi32, #tpu.memory_space<smem>>) -> (i32, i32) {
    %c0_i32 = arith.constant 0 : i32
    %c0_i32_0 = arith.constant 0 : i32
    %c0_i32_1 = arith.constant 0 : i32
    return %c0_i32, %c0_i32_0 : i32, i32
  }
  func.func @transform_6(%arg0: i32, %arg1: memref<1xi32, #tpu.memory_space<smem>>) -> (i32, i32) {
    %c0_i32 = arith.constant 0 : i32
    %c0_i32_0 = arith.constant 0 : i32
    %c0_i32_1 = arith.constant 0 : i32
    return %c0_i32, %c0_i32_0 : i32, i32
  }
}

</mosaic_0001>

<llo_original>
// kernel: tpu_custom_call.1
$region0: #{tpu_custom_call.1}
  #allocation0 [shape = 'u32[]', space=smem, size = 0x4, offset = 0x4, fixed_abs, tag = 'smem constant byte address 0x4 - core index']
  #allocation1 [shape = 'u32[144,128]{1,0:T(1,128)}', space=vmem, size = 0x12000, scoped, tag = 'internal scratch']
  #allocation2 [shape = 'f32[1,128]{1,0:T(1,128)}', space=vmem, size = 0x200, scoped, tag = 'scratch operand']
  #allocation3 [shape = 'f32[8,128]{1,0:T(8,128)}', space=vmem, size = 0x1000, scoped, tag = 'scratch operand']
  #allocation4 [shape = 'f32[8,128]{1,0:T(8,128)}', space=vmem, size = 0x1000, scoped, tag = 'scratch operand']
  #allocation5 [shape = 's32[1]{0}', space=sflag, size = 0x4, scoped, tag = 'scoped memory for tpu_custom_call.1']
  #allocation6 [shape = 's32[1]{0:T(128)S(6)}', space=smem, size = 0x200, scoped, tag = 'prefetched SMEM operand 0']
  %s0 = inlined_call_operand.<no memory space> [shape: s32[1], index: 0, kind: input, shape index: {}]
  %s1 = inlined_call_operand.vmem [shape: s32[1,256], index: 1, kind: input, shape index: {}]
  %s2 = inlined_call_operand.hbm [shape: bf16[256,128], index: 2, kind: input, shape index: {}]
  %s3 = inlined_call_operand.hbm [shape: bf16[128,128], index: 3, kind: input, shape index: {}]
  %s4 = inlined_call_operand.vmem [shape: f32[1,128], index: 4, kind: input, shape index: {}]
  %s5 = inlined_call_operand.hbm [shape: bf16[128,128], index: 5, kind: input, shape index: {}]
  %s6 = inlined_call_operand.vmem [shape: f32[1,128], index: 6, kind: input, shape index: {}]
  %s7 = inlined_call_operand.hbm [shape: f32[8,128], index: 7, kind: output, shape index: {}]
  %s8 = sld [smem:[#allocation0]]
  $region54: #{tpu_custom_call.1} parent=0
    _
  %s10 = ssub.s32 1, %s8
  %s11 = scalar_select 0, %s10, %s8
  %12 = sst [smem:[#allocation6]] %s0
  $region1: #{tpu_custom_call.1} parent=0
    #allocation7 [shape = 'u8[65536]{0}', space=vmem, size = 0x10000, scoped, tag = 'input window, operand 2, single buffered']
    #allocation8 [shape = 's32[1]{0}', space=sflag, size = 0x4, scoped, tag = 'scoped memory for tpu_custom_call.1']
    #allocation9 [shape = 's32[1]{0}', space=sflag, size = 0x4, scoped, tag = 'scoped memory for tpu_custom_call.1']
    #allocation10 [shape = 'u8[32768]{0}', space=vmem, size = 0x8000, scoped, tag = 'input window, operand 3, single buffered']
    #allocation11 [shape = 's32[1]{0}', space=sflag, size = 0x4, scoped, tag = 'scoped memory for tpu_custom_call.1']
    #allocation12 [shape = 'u8[32768]{0}', space=vmem, size = 0x8000, scoped, tag = 'input window, operand 5, single buffered']
    #allocation13 [shape = 'u8[4096]{0}', space=vmem, size = 0x1000, scoped, tag = 'output window, operand 0, single buffered']
    %13 = vsyncpa [#allocation8], 0
    %14 = vsyncpa [#allocation11], 0
    %15 = vsyncpa [#allocation9], 0
    // Predicated region
    $region2: #{tpu_custom_call.1} parent=1 // pred_check
      _
    $region3: #{tpu_custom_call.1} parent=1 // pred_check_branch
      %17 = sbr.rel (0) target = $region5
    $region4: #{tpu_custom_call.1} parent=1 // pred_region
      _
    $region5: #{tpu_custom_call.1} parent=1 // pred_fallthru
      _
    // Predicated region
    $region6: #{tpu_custom_call.1} parent=1 // pred_check
      _
    $region7: #{tpu_custom_call.1} parent=1 // pred_check_branch
      %19 = sbr.rel (0) target = $region9
    $region8: #{tpu_custom_call.1} parent=1 // pred_region
      %s21 = ssub.s32 2048, 2048
      %22 = vsyncadd [#allocation8], %s21
      %s23 = sshll.u32 [#allocation7], 4
      %s24 = int_to_ptr.vmem [resolvable:$true] %s23
      %29 = dma.hbm_to_vmem [thread:$0]  %s2, 2048, %s24, [#allocation8], 64, 64, 4
    $region9: #{tpu_custom_call.1} parent=1 // pred_fallthru
      _
    // Predicated region
    $region10: #{tpu_custom_call.1} parent=1 // pred_check
      _
    $region11: #{tpu_custom_call.1} parent=1 // pred_check_branch
      %31 = sbr.rel (0) target = $region13
    $region12: #{tpu_custom_call.1} parent=1 // pred_region
      %s33 = ssub.s32 1024, 1024
      %34 = vsyncadd [#allocation11], %s33
      %s35 = sshll.u32 [#allocation10], 4
      %s36 = int_to_ptr.vmem [resolvable:$true] %s35
      %41 = dma.hbm_to_vmem [thread:$0]  %s3, 1024, %s36, [#allocation11], 64, 64, 4
    $region13: #{tpu_custom_call.1} parent=1 // pred_fallthru
      _
    // Predicated region
    $region14: #{tpu_custom_call.1} parent=1 // pred_check
      _
    $region15: #{tpu_custom_call.1} parent=1 // pred_check_branch
      %43 = sbr.rel (0) target = $region17
    $region16: #{tpu_custom_call.1} parent=1 // pred_region
      _
    $region17: #{tpu_custom_call.1} parent=1 // pred_fallthru
      _
    // Predicated region
    $region18: #{tpu_custom_call.1} parent=1 // pred_check
      _
    $region19: #{tpu_custom_call.1} parent=1 // pred_check_branch
      %45 = sbr.rel (0) target = $region21
    $region20: #{tpu_custom_call.1} parent=1 // pred_region
      %s47 = ssub.s32 1024, 1024
      %48 = vsyncadd [#allocation11], %s47
      %s49 = sshll.u32 [#allocation12], 4
      %s50 = int_to_ptr.vmem [resolvable:$true] %s49
      %55 = dma.hbm_to_vmem [thread:$0]  %s5, 1024, %s50, [#allocation11], 64, 64, 4
    $region21: #{tpu_custom_call.1} parent=1 // pred_fallthru
      _
    // Predicated region
    $region22: #{tpu_custom_call.1} parent=1 // pred_check
      _
    $region23: #{tpu_custom_call.1} parent=1 // pred_check_branch
      %57 = sbr.rel (0) target = $region25
    $region24: #{tpu_custom_call.1} parent=1 // pred_region
      _
    $region25: #{tpu_custom_call.1} parent=1 // pred_fallthru
      _
    // Predicated region
    $region26: #{tpu_custom_call.1} parent=1 // pred_check
      _
    $region27: #{tpu_custom_call.1} parent=1 // pred_check_branch
      %59 = sbr.rel (0) target = $region29
    $region28: #{tpu_custom_call.1} parent=1 // pred_region
      %60 = dma.done [#allocation8], 2048
    $region29: #{tpu_custom_call.1} parent=1 // pred_fallthru
      _
    // Predicated region
    $region30: #{tpu_custom_call.1} parent=1 // pred_check
      _
    $region31: #{tpu_custom_call.1} parent=1 // pred_check_branch
      %62 = sbr.rel (0) target = $region33
    $region32: #{tpu_custom_call.1} parent=1 // pred_region
      %63 = dma.done [#allocation11], 1024
    $region33: #{tpu_custom_call.1} parent=1 // pred_fallthru
      _
    // Predicated region
    $region34: #{tpu_custom_call.1} parent=1 // pred_check
      _
    $region35: #{tpu_custom_call.1} parent=1 // pred_check_branch
      %65 = sbr.rel (0) target = $region37
    $region36: #{tpu_custom_call.1} parent=1 // pred_region
      %66 = dma.done [#allocation11], 1024
    $region37: #{tpu_custom_call.1} parent=1 // pred_fallthru
      _
    %p68 = scmp.eq.s32.totalorder 0, 0
    // Predicated region
    $region38: #{tpu_custom_call.1} parent=1 // pred_check
      %p69 = pneg %p68
    $region39: #{tpu_custom_call.1} parent=1 // pred_check_branch
      %71 = sbr.rel (%p69) target = $region41
    $region40: #{tpu_custom_call.1} parent=1 // pred_region
      %72 = vst [vmem:[#allocation2] sm:$0x1] -inf
      %73 = vst [vmem:[#allocation3] sm:$0xff] 0.0
      %74 = vst [vmem:[#allocation4] sm:$0xff] 0.0
    $region41: #{tpu_custom_call.1} parent=1 // pred_fallthru
      _
    %v75 = vld [vmem:[#allocation7] sm:$0xf]
    %v76 = vld [vmem:[#allocation7 + $0x4] sm:$0xf]
    %v77 = vld [vmem:[#allocation7 + $0x8] sm:$0xf]
    %v78 = vld [vmem:[#allocation7 + $0xc] sm:$0xf]
    %v79 = vld [vmem:[#allocation7 + $0x10] sm:$0xf]
    %v80 = vld [vmem:[#allocation7 + $0x14] sm:$0xf]
    %v81 = vld [vmem:[#allocation7 + $0x18] sm:$0xf]
    %v82 = vld [vmem:[#allocation7 + $0x1c] sm:$0xf]
    %v83 = vld [vmem:[#allocation7 + $0x20] sm:$0xf]
    %v84 = vld [vmem:[#allocation7 + $0x24] sm:$0xf]
    %v85 = vld [vmem:[#allocation7 + $0x28] sm:$0xf]
    %v86 = vld [vmem:[#allocation7 + $0x2c] sm:$0xf]
    %v87 = vld [vmem:[#allocation7 + $0x30] sm:$0xf]
    %v88 = vld [vmem:[#allocation7 + $0x34] sm:$0xf]
    %v89 = vld [vmem:[#allocation7 + $0x38] sm:$0xf]
    %v90 = vld [vmem:[#allocation7 + $0x3c] sm:$0xf]
    %v91 = vld [vmem:[#allocation7 + $0x40] sm:$0xf]
    %v92 = vld [vmem:[#allocation7 + $0x44] sm:$0xf]
    %v93 = vld [vmem:[#allocation7 + $0x48] sm:$0xf]
    %v94 = vld [vmem:[#allocation7 + $0x4c] sm:$0xf]
    %v95 = vld [vmem:[#allocation7 + $0x50] sm:$0xf]
    %v96 = vld [vmem:[#allocation7 + $0x54] sm:$0xf]
    %v97 = vld [vmem:[#allocation7 + $0x58] sm:$0xf]
    %v98 = vld [vmem:[#allocation7 + $0x5c] sm:$0xf]
    %v99 = vld [vmem:[#allocation7 + $0x60] sm:$0xf]
    %v100 = vld [vmem:[#allocation7 + $0x64] sm:$0xf]
    %v101 = vld [vmem:[#allocation7 + $0x68] sm:$0xf]
    %v102 = vld [vmem:[#allocation7 + $0x6c] sm:$0xf]
    %v103 = vld [vmem:[#allocation7 + $0x70] sm:$0xf]
    %v104 = vld [vmem:[#allocation7 + $0x74] sm:$0xf]
    %v105 = vld [vmem:[#allocation7 + $0x78] sm:$0xf]
    %v106 = vld [vmem:[#allocation7 + $0x7c] sm:$0xf]
    %v107 = vld [vmem:[#allocation10] sm:$0xf]
    %v108 = vld [vmem:[#allocation10 + $0x4] sm:$0xf]
    %v109 = vld [vmem:[#allocation10 + $0x8] sm:$0xf]
    %v110 = vld [vmem:[#allocation10 + $0xc] sm:$0xf]
    %v111 = vld [vmem:[#allocation10 + $0x10] sm:$0xf]
    %v112 = vld [vmem:[#allocation10 + $0x14] sm:$0xf]
    %v113 = vld [vmem:[#allocation10 + $0x18] sm:$0xf]
    %v114 = vld [vmem:[#allocation10 + $0x1c] sm:$0xf]
    %v115 = vld [vmem:[#allocation10 + $0x20] sm:$0xf]
    %v116 = vld [vmem:[#allocation10 + $0x24] sm:$0xf]
    %v117 = vld [vmem:[#allocation10 + $0x28] sm:$0xf]
    %v118 = vld [vmem:[#allocation10 + $0x2c] sm:$0xf]
    %v119 = vld [vmem:[#allocation10 + $0x30] sm:$0xf]
    %v120 = vld [vmem:[#allocation10 + $0x34] sm:$0xf]
    %v121 = vld [vmem:[#allocation10 + $0x38] sm:$0xf]
    %v122 = vld [vmem:[#allocation10 + $0x3c] sm:$0xf]
    %v123 = vld [vmem:[%s4] sm:$0x1]
    %v125 = vlaneseq
    %v126 = vshrl.u32 %v125, 7
    %v127 = vsub.s32 0, %v126
    %v128 = vrot.slane %v123, %v127
    %v162 = vunpack.c.l.b16 %v75
    %v163 = vunpack.c.l.b16 %v76
    %v164 = vunpack.c.l.b16 %v77
    %v165 = vunpack.c.l.b16 %v78
    %v166 = vunpack.c.l.b16 %v79
    %v167 = vunpack.c.l.b16 %v80
    %v168 = vunpack.c.l.b16 %v81
    %v169 = vunpack.c.l.b16 %v82
    %v170 = vunpack.c.l.b16 %v83
    %v171 = vunpack.c.l.b16 %v84
    %v172 = vunpack.c.l.b16 %v85
    %v173 = vunpack.c.l.b16 %v86
    %v174 = vunpack.c.l.b16 %v87
    %v175 = vunpack.c.l.b16 %v88
    %v176 = vunpack.c.l.b16 %v89
    %v177 = vunpack.c.l.b16 %v90
    %v178 = vunpack.c.l.b16 %v91
    %v179 = vunpack.c.l.b16 %v92
    %v180 = vunpack.c.l.b16 %v93
    %v181 = vunpack.c.l.b16 %v94
    %v182 = vunpack.c.l.b16 %v95
    %v183 = vunpack.c.l.b16 %v96
    %v184 = vunpack.c.l.b16 %v97
    %v185 = vunpack.c.l.b16 %v98
    %v186 = vunpack.c.l.b16 %v99
    %v187 = vunpack.c.l.b16 %v100
    %v188 = vunpack.c.l.b16 %v101
    %v189 = vunpack.c.l.b16 %v102
    %v190 = vunpack.c.l.b16 %v103
    %v191 = vunpack.c.l.b16 %v104
    %v192 = vunpack.c.l.b16 %v105
    %v193 = vunpack.c.l.b16 %v106
    %v194 = vpack.c.b16 %v163, %v162
    %v195 = vpack.c.b16 %v165, %v164
    %v196 = vpack.c.b16 %v167, %v166
    %v197 = vpack.c.b16 %v169, %v168
    %v198 = vpack.c.b16 %v171, %v170
    %v199 = vpack.c.b16 %v173, %v172
    %v200 = vpack.c.b16 %v175, %v174
    %v201 = vpack.c.b16 %v177, %v176
    %v202 = vpack.c.b16 %v179, %v178
    %v203 = vpack.c.b16 %v181, %v180
    %v204 = vpack.c.b16 %v183, %v182
    %v205 = vpack.c.b16 %v185, %v184
    %v206 = vpack.c.b16 %v187, %v186
    %v207 = vpack.c.b16 %v189, %v188
    %v208 = vpack.c.b16 %v191, %v190
    %v209 = vpack.c.b16 %v193, %v192
    %v242 = vunpack.c.l.b16 %v107
    %v243 = vunpack.c.l.b16 %v108
    %v244 = vunpack.c.l.b16 %v109
    %v245 = vunpack.c.l.b16 %v110
    %v246 = vunpack.c.l.b16 %v111
    %v247 = vunpack.c.l.b16 %v112
    %v248 = vunpack.c.l.b16 %v113
    %v249 = vunpack.c.l.b16 %v114
    %v250 = vunpack.c.l.b16 %v115
    %v251 = vunpack.c.l.b16 %v116
    %v252 = vunpack.c.l.b16 %v117
    %v253 = vunpack.c.l.b16 %v118
    %v254 = vunpack.c.l.b16 %v119
    %v255 = vunpack.c.l.b16 %v120
    %v256 = vunpack.c.l.b16 %v121
    %v257 = vunpack.c.l.b16 %v122
    %v258 = vpack.c.b16 %v243, %v242
    %v259 = vpack.c.b16 %v245, %v244
    %v260 = vpack.c.b16 %v247, %v246
    %v261 = vpack.c.b16 %v249, %v248
    %v262 = vpack.c.b16 %v251, %v250
    %v263 = vpack.c.b16 %v253, %v252
    %v264 = vpack.c.b16 %v255, %v254
    %v265 = vpack.c.b16 %v257, %v256
    %274 = vmatprep.subr.bf16.mxu0 0
    %275 = vmatpush1.bf16.msra.mxu0 %v258
    %276 = vmatprep.subr.bf16.mxu0 0
    %277 = vmatpush1.bf16.msra.mxu0 %v259
    %278 = vmatprep.subr.bf16.mxu0 0
    %279 = vmatpush1.bf16.msra.mxu0 %v260
    %280 = vmatprep.subr.bf16.mxu0 0
    %281 = vmatpush1.bf16.msra.mxu0 %v261
    %282 = vmatprep.subr.bf16.mxu0 0
    %283 = vmatpush1.bf16.msra.mxu0 %v262
    %284 = vmatprep.subr.bf16.mxu0 0
    %285 = vmatpush1.bf16.msra.mxu0 %v263
    %286 = vmatprep.subr.bf16.mxu0 0
    %287 = vmatpush1.bf16.msra.mxu0 %v264
    %288 = vmatprep.subr.bf16.mxu0 0
    %289 = vmatpush1.bf16.msra.mxu0 %v265
    %290 = vmatprep.subr.bf16.mxu0 0
    %291 = vmatpush1.bf16.msra.mxu0 0
    %292 = vmatprep.subr.bf16.mxu0 0
    %293 = vmatpush1.bf16.msra.mxu0 0
    %294 = vmatprep.subr.bf16.mxu0 0
    %295 = vmatpush1.bf16.msra.mxu0 0
    %296 = vmatprep.subr.bf16.mxu0 0
    %297 = vmatpush1.bf16.msra.mxu0 0
    %298 = vmatprep.subr.bf16.mxu0 0
    %299 = vmatpush1.bf16.msra.mxu0 0
    %300 = vmatprep.subr.bf16.mxu0 0
    %301 = vmatpush1.bf16.msra.mxu0 0
    %302 = vmatprep.subr.bf16.mxu0 0
    %303 = vmatpush1.bf16.msra.mxu0 0
    %304 = vmatprep.subr.bf16.mxu0 0
    %305 = vmatpush1.bf16.msra.mxu0 0
    %306 = vmatprep.mubr.bf16.mxu0 0
    %307 = vmatmul.mubr.bf16.gmra.mrb[0].mxu0 %v194
    %v308 = vpop.f32.mrb[0].mxu0
    %v309 = vadd.f32 %v128, %v308
    %v310 = vpop.f32.mrb[0].mxu0
    %v311 = vpop.f32.mrb[0].mxu0
    %v312 = vadd.f32 %v128, %v311
    %v313 = vpop.f32.mrb[0].mxu0
    %314 = vmatprep.mubr.bf16.mxu0 0
    %315 = vmatmul.mubr.bf16.gmra.mrb[0].mxu0 %v195
    %v316 = vpop.f32.mrb[0].mxu0
    %v317 = vadd.f32 %v128, %v316
    %v318 = vpop.f32.mrb[0].mxu0
    %v319 = vpop.f32.mrb[0].mxu0
    %v320 = vadd.f32 %v128, %v319
    %v321 = vpop.f32.mrb[0].mxu0
    %322 = vmatprep.mubr.bf16.mxu0 0
    %323 = vmatmul.mubr.bf16.gmra.mrb[0].mxu0 %v196
    %v324 = vpop.f32.mrb[0].mxu0
    %v325 = vadd.f32 %v128, %v324
    %v326 = vpop.f32.mrb[0].mxu0
    %v327 = vpop.f32.mrb[0].mxu0
    %v328 = vadd.f32 %v128, %v327
    %v329 = vpop.f32.mrb[0].mxu0
    %330 = vmatprep.mubr.bf16.mxu0 0
    %331 = vmatmul.mubr.bf16.gmra.mrb[0].mxu0 %v197
    %v332 = vpop.f32.mrb[0].mxu0
    %v333 = vadd.f32 %v128, %v332
    %v334 = vpop.f32.mrb[0].mxu0
    %v335 = vpop.f32.mrb[0].mxu0
    %v336 = vadd.f32 %v128, %v335
    %v337 = vpop.f32.mrb[0].mxu0
    %338 = vmatprep.mubr.bf16.mxu0 0
    %339 = vmatmul.mubr.bf16.gmra.mrb[0].mxu0 %v198
    %v340 = vpop.f32.mrb[0].mxu0
    %v341 = vadd.f32 %v128, %v340
    %v342 = vpop.f32.mrb[0].mxu0
    %v343 = vpop.f32.mrb[0].mxu0
    %v344 = vadd.f32 %v128, %v343
    %v345 = vpop.f32.mrb[0].mxu0
    %346 = vmatprep.mubr.bf16.mxu0 0
    %347 = vmatmul.mubr.bf16.gmra.mrb[0].mxu0 %v199
    %v348 = vpop.f32.mrb[0].mxu0
    %v349 = vadd.f32 %v128, %v348
    %v350 = vpop.f32.mrb[0].mxu0
    %v351 = vpop.f32.mrb[0].mxu0
    %v352 = vadd.f32 %v128, %v351
    %v353 = vpop.f32.mrb[0].mxu0
    %354 = vmatprep.mubr.bf16.mxu0 0
    %355 = vmatmul.mubr.bf16.gmra.mrb[0].mxu0 %v200
    %v356 = vpop.f32.mrb[0].mxu0
    %v357 = vadd.f32 %v128, %v356
    %v358 = vpop.f32.mrb[0].mxu0
    %v359 = vpop.f32.mrb[0].mxu0
    %v360 = vadd.f32 %v128, %v359
    %v361 = vpop.f32.mrb[0].mxu0
    %362 = vmatprep.mubr.bf16.mxu0 0
    %363 = vmatmul.mubr.bf16.gmra.mrb[0].mxu0 %v201
    %v364 = vpop.f32.mrb[0].mxu0
    %v365 = vadd.f32 %v128, %v364
    %v366 = vpop.f32.mrb[0].mxu0
    %v367 = vpop.f32.mrb[0].mxu0
    %v368 = vadd.f32 %v128, %v367
    %v369 = vpop.f32.mrb[0].mxu0
    %370 = vmatprep.mubr.bf16.mxu0 0
    %371 = vmatmul.mubr.bf16.gmra.mrb[0].mxu0 %v202
    %v372 = vpop.f32.mrb[0].mxu0
    %v373 = vadd.f32 %v128, %v372
    %v374 = vpop.f32.mrb[0].mxu0
    %v375 = vpop.f32.mrb[0].mxu0
    %v376 = vadd.f32 %v128, %v375
    %v377 = vpop.f32.mrb[0].mxu0
    %378 = vmatprep.mubr.bf16.mxu0 0
    %379 = vmatmul.mubr.bf16.gmra.mrb[0].mxu0 %v203
    %v380 = vpop.f32.mrb[0].mxu0
    %v381 = vadd.f32 %v128, %v380
    %v382 = vpop.f32.mrb[0].mxu0
    %v383 = vpop.f32.mrb[0].mxu0
    %v384 = vadd.f32 %v128, %v383
    %v385 = vpop.f32.mrb[0].mxu0
    %386 = vmatprep.mubr.bf16.mxu0 0
    %387 = vmatmul.mubr.bf16.gmra.mrb[0].mxu0 %v204
    %v388 = vpop.f32.mrb[0].mxu0
    %v389 = vadd.f32 %v128, %v388
    %v390 = vpop.f32.mrb[0].mxu0
    %v391 = vpop.f32.mrb[0].mxu0
    %v392 = vadd.f32 %v128, %v391
    %v393 = vpop.f32.mrb[0].mxu0
    %394 = vmatprep.mubr.bf16.mxu0 0
    %395 = vmatmul.mubr.bf16.gmra.mrb[0].mxu0 %v205
    %v396 = vpop.f32.mrb[0].mxu0
    %v397 = vadd.f32 %v128, %v396
    %v398 = vpop.f32.mrb[0].mxu0
    %v399 = vpop.f32.mrb[0].mxu0
    %v400 = vadd.f32 %v128, %v399
    %v401 = vpop.f32.mrb[0].mxu0
    %402 = vmatprep.mubr.bf16.mxu0 0
    %403 = vmatmul.mubr.bf16.gmra.mrb[0].mxu0 %v206
    %v404 = vpop.f32.mrb[0].mxu0
    %v405 = vadd.f32 %v128, %v404
    %v406 = vpop.f32.mrb[0].mxu0
    %v407 = vpop.f32.mrb[0].mxu0
    %v408 = vadd.f32 %v128, %v407
    %v409 = vpop.f32.mrb[0].mxu0
    %410 = vmatprep.mubr.bf16.mxu0 0
    %411 = vmatmul.mubr.bf16.gmra.mrb[0].mxu0 %v207
    %v412 = vpop.f32.mrb[0].mxu0
    %v413 = vadd.f32 %v128, %v412
    %v414 = vpop.f32.mrb[0].mxu0
    %v415 = vpop.f32.mrb[0].mxu0
    %v416 = vadd.f32 %v128, %v415
    %v417 = vpop.f32.mrb[0].mxu0
    %418 = vmatprep.mubr.bf16.mxu0 0
    %419 = vmatmul.mubr.bf16.gmra.mrb[0].mxu0 %v208
    %v420 = vpop.f32.mrb[0].mxu0
    %v421 = vadd.f32 %v128, %v420
    %v422 = vpop.f32.mrb[0].mxu0
    %v423 = vpop.f32.mrb[0].mxu0
    %v424 = vadd.f32 %v128, %v423
    %v425 = vpop.f32.mrb[0].mxu0
    %426 = vmatprep.mubr.bf16.mxu0 0
    %427 = vmatmul.mubr.bf16.gmra.mrb[0].mxu0 %v209
    %v428 = vpop.f32.mrb[0].mxu0
    %v429 = vadd.f32 %v128, %v428
    %v430 = vpop.f32.mrb[0].mxu0
    %v431 = vpop.f32.mrb[0].mxu0
    %v432 = vadd.f32 %v128, %v431
    %v433 = vpop.f32.mrb[0].mxu0
    %434 = vdwg.mxu0
    %v435 = vmax.f32 %v309, 0.0
    %v436 = vmax.f32 %v312, 0.0
    %v437 = vmax.f32 %v317, 0.0
    %v438 = vmax.f32 %v320, 0.0
    %v439 = vmax.f32 %v325, 0.0
    %v440 = vmax.f32 %v328, 0.0
    %v441 = vmax.f32 %v333, 0.0
    %v442 = vmax.f32 %v336, 0.0
    %v443 = vmax.f32 %v341, 0.0
    %v444 = vmax.f32 %v344, 0.0
    %v445 = vmax.f32 %v349, 0.0
    %v446 = vmax.f32 %v352, 0.0
    %v447 = vmax.f32 %v357, 0.0
    %v448 = vmax.f32 %v360, 0.0
    %v449 = vmax.f32 %v365, 0.0
    %v450 = vmax.f32 %v368, 0.0
    %v451 = vmax.f32 %v373, 0.0
    %v452 = vmax.f32 %v376, 0.0
    %v453 = vmax.f32 %v381, 0.0
    %v454 = vmax.f32 %v384, 0.0
    %v455 = vmax.f32 %v389, 0.0
    %v456 = vmax.f32 %v392, 0.0
    %v457 = vmax.f32 %v397, 0.0
    %v458 = vmax.f32 %v400, 0.0
    %v459 = vmax.f32 %v405, 0.0
    %v460 = vmax.f32 %v408, 0.0
    %v461 = vmax.f32 %v413, 0.0
    %v462 = vmax.f32 %v416, 0.0
    %v463 = vmax.f32 %v421, 0.0
    %v464 = vmax.f32 %v424, 0.0
    %v465 = vmax.f32 %v429, 0.0
    %v466 = vmax.f32 %v432, 0.0
    %v467 = vpack.c.bf16 %v436, %v435
    %v468 = vpack.c.bf16 %v438, %v437
    %v469 = vpack.c.bf16 %v440, %v439
    %v470 = vpack.c.bf16 %v442, %v441
    %v471 = vpack.c.bf16 %v444, %v443
    %v472 = vpack.c.bf16 %v446, %v445
    %v473 = vpack.c.bf16 %v448, %v447
    %v474 = vpack.c.bf16 %v450, %v449
    %v475 = vpack.c.bf16 %v452, %v451
    %v476 = vpack.c.bf16 %v454, %v453
    %v477 = vpack.c.bf16 %v456, %v455
    %v478 = vpack.c.bf16 %v458, %v457
    %v479 = vpack.c.bf16 %v460, %v459
    %v480 = vpack.c.bf16 %v462, %v461
    %v481 = vpack.c.bf16 %v464, %v463
    %v482 = vpack.c.bf16 %v466, %v465
    %v483 = vld [vmem:[#allocation12] sm:$0xf]
    %v484 = vld [vmem:[#allocation12 + $0x4] sm:$0xf]
    %v485 = vld [vmem:[#allocation12 + $0x8] sm:$0xf]
    %v486 = vld [vmem:[#allocation12 + $0xc] sm:$0xf]
    %v487 = vld [vmem:[#allocation12 + $0x10] sm:$0xf]
    %v488 = vld [vmem:[#allocation12 + $0x14] sm:$0xf]
    %v489 = vld [vmem:[#allocation12 + $0x18] sm:$0xf]
    %v490 = vld [vmem:[#allocation12 + $0x1c] sm:$0xf]
    %v491 = vld [vmem:[#allocation12 + $0x20] sm:$0xf]
    %v492 = vld [vmem:[#allocation12 + $0x24] sm:$0xf]
    %v493 = vld [vmem:[#allocation12 + $0x28] sm:$0xf]
    %v494 = vld [vmem:[#allocation12 + $0x2c] sm:$0xf]
    %v495 = vld [vmem:[#allocation12 + $0x30] sm:$0xf]
    %v496 = vld [vmem:[#allocation12 + $0x34] sm:$0xf]
    %v497 = vld [vmem:[#allocation12 + $0x38] sm:$0xf]
    %v498 = vld [vmem:[#allocation12 + $0x3c] sm:$0xf]
    %v499 = vld [vmem:[%s6] sm:$0x1]
    %v501 = vlaneseq
    %v502 = vshrl.u32 %v501, 7
    %v503 = vsub.s32 0, %v502
    %v504 = vrot.slane %v499, %v503
    %v522 = vunpack.c.l.b16 %v483
    %v523 = vunpack.c.l.b16 %v484
    %v524 = vunpack.c.l.b16 %v485
    %v525 = vunpack.c.l.b16 %v486
    %v526 = vunpack.c.l.b16 %v487
    %v527 = vunpack.c.l.b16 %v488
    %v528 = vunpack.c.l.b16 %v489
    %v529 = vunpack.c.l.b16 %v490
    %v530 = vunpack.c.l.b16 %v491
    %v531 = vunpack.c.l.b16 %v492
    %v532 = vunpack.c.l.b16 %v493
    %v533 = vunpack.c.l.b16 %v494
    %v534 = vunpack.c.l.b16 %v495
    %v535 = vunpack.c.l.b16 %v496
    %v536 = vunpack.c.l.b16 %v497
    %v537 = vunpack.c.l.b16 %v498
    %v538 = vpack.c.b16 %v523, %v522
    %v539 = vpack.c.b16 %v525, %v524
    %v540 = vpack.c.b16 %v527, %v526
    %v541 = vpack.c.b16 %v529, %v528
    %v542 = vpack.c.b16 %v531, %v530
    %v543 = vpack.c.b16 %v533, %v532
    %v544 = vpack.c.b16 %v535, %v534
    %v545 = vpack.c.b16 %v537, %v536
    %554 = vmatprep.subr.bf16.mxu0 0
    %555 = vmatpush1.bf16.msra.mxu0 %v538
    %556 = vmatprep.subr.bf16.mxu0 0
    %557 = vmatpush1.bf16.msra.mxu0 %v539
    %558 = vmatprep.subr.bf16.mxu0 0
    %559 = vmatpush1.bf16.msra.mxu0 %v540
    %560 = vmatprep.subr.bf16.mxu0 0
    %561 = vmatpush1.bf16.msra.mxu0 %v541
    %562 = vmatprep.subr.bf16.mxu0 0
    %563 = vmatpush1.bf16.msra.mxu0 %v542
    %564 = vmatprep.subr.bf16.mxu0 0
    %565 = vmatpush1.bf16.msra.mxu0 %v543
    %566 = vmatprep.subr.bf16.mxu0 0
    %567 = vmatpush1.bf16.msra.mxu0 %v544
    %568 = vmatprep.subr.bf16.mxu0 0
    %569 = vmatpush1.bf16.msra.mxu0 %v545
    %570 = vmatprep.subr.bf16.mxu0 0
    %571 = vmatpush1.bf16.msra.mxu0 0
    %572 = vmatprep.subr.bf16.mxu0 0
    %573 = vmatpush1.bf16.msra.mxu0 0
    %574 = vmatprep.subr.bf16.mxu0 0
    %575 = vmatpush1.bf16.msra.mxu0 0
    %576 = vmatprep.subr.bf16.mxu0 0
    %577 = vmatpush1.bf16.msra.mxu0 0
    %578 = vmatprep.subr.bf16.mxu0 0
    %579 = vmatpush1.bf16.msra.mxu0 0
    %580 = vmatprep.subr.bf16.mxu0 0
    %581 = vmatpush1.bf16.msra.mxu0 0
    %582 = vmatprep.subr.bf16.mxu0 0
    %583 = vmatpush1.bf16.msra.mxu0 0
    %584 = vmatprep.subr.bf16.mxu0 0
    %585 = vmatpush1.bf16.msra.mxu0 0
    %586 = vmatprep.mubr.bf16.mxu0 0
    %587 = vmatmul.mubr.bf16.gmra.mrb[0].mxu0 %v467
    %v588 = vpop.f32.mrb[0].mxu0
    %v589 = vadd.f32 %v504, %v588
    %v590 = vpop.f32.mrb[0].mxu0
    %v591 = vpop.f32.mrb[0].mxu0
    %v592 = vadd.f32 %v504, %v591
    %v593 = vpop.f32.mrb[0].mxu0
    %594 = vmatprep.mubr.bf16.mxu0 0
    %595 = vmatmul.mubr.bf16.gmra.mrb[0].mxu0 %v468
    %v596 = vpop.f32.mrb[0].mxu0
    %v597 = vadd.f32 %v504, %v596
    %v598 = vpop.f32.mrb[0].mxu0
    %v599 = vpop.f32.mrb[0].mxu0
    %v600 = vadd.f32 %v504, %v599
    %v601 = vpop.f32.mrb[0].mxu0
    %602 = vmatprep.mubr.bf16.mxu0 0
    %603 = vmatmul.mubr.bf16.gmra.mrb[0].mxu0 %v469
    %v604 = vpop.f32.mrb[0].mxu0
    %v605 = vadd.f32 %v504, %v604
    %v606 = vpop.f32.mrb[0].mxu0
    %v607 = vpop.f32.mrb[0].mxu0
    %v608 = vadd.f32 %v504, %v607
    %v609 = vpop.f32.mrb[0].mxu0
    %610 = vmatprep.mubr.bf16.mxu0 0
    %611 = vmatmul.mubr.bf16.gmra.mrb[0].mxu0 %v470
    %v612 = vpop.f32.mrb[0].mxu0
    %v613 = vadd.f32 %v504, %v612
    %v614 = vpop.f32.mrb[0].mxu0
    %v615 = vpop.f32.mrb[0].mxu0
    %v616 = vadd.f32 %v504, %v615
    %v617 = vpop.f32.mrb[0].mxu0
    %618 = vmatprep.mubr.bf16.mxu0 0
    %619 = vmatmul.mubr.bf16.gmra.mrb[0].mxu0 %v471
    %v620 = vpop.f32.mrb[0].mxu0
    %v621 = vadd.f32 %v504, %v620
    %v622 = vpop.f32.mrb[0].mxu0
    %v623 = vpop.f32.mrb[0].mxu0
    %v624 = vadd.f32 %v504, %v623
    %v625 = vpop.f32.mrb[0].mxu0
    %626 = vmatprep.mubr.bf16.mxu0 0
    %627 = vmatmul.mubr.bf16.gmra.mrb[0].mxu0 %v472
    %v628 = vpop.f32.mrb[0].mxu0
    %v629 = vadd.f32 %v504, %v628
    %v630 = vpop.f32.mrb[0].mxu0
    %v631 = vpop.f32.mrb[0].mxu0
    %v632 = vadd.f32 %v504, %v631
    %v633 = vpop.f32.mrb[0].mxu0
    %634 = vmatprep.mubr.bf16.mxu0 0
    %635 = vmatmul.mubr.bf16.gmra.mrb[0].mxu0 %v473
    %v636 = vpop.f32.mrb[0].mxu0
    %v637 = vadd.f32 %v504, %v636
    %v638 = vpop.f32.mrb[0].mxu0
    %v639 = vpop.f32.mrb[0].mxu0
    %v640 = vadd.f32 %v504, %v639
    %v641 = vpop.f32.mrb[0].mxu0
    %642 = vmatprep.mubr.bf16.mxu0 0
    %643 = vmatmul.mubr.bf16.gmra.mrb[0].mxu0 %v474
    %v644 = vpop.f32.mrb[0].mxu0
    %v645 = vadd.f32 %v504, %v644
    %v646 = vpop.f32.mrb[0].mxu0
    %v647 = vpop.f32.mrb[0].mxu0
    %v648 = vadd.f32 %v504, %v647
    %v649 = vpop.f32.mrb[0].mxu0
    %650 = vmatprep.mubr.bf16.mxu0 0
    %651 = vmatmul.mubr.bf16.gmra.mrb[0].mxu0 %v475
    %v652 = vpop.f32.mrb[0].mxu0
    %v653 = vadd.f32 %v504, %v652
    %v654 = vpop.f32.mrb[0].mxu0
    %v655 = vpop.f32.mrb[0].mxu0
    %v656 = vadd.f32 %v504, %v655
    %v657 = vpop.f32.mrb[0].mxu0
    %658 = vmatprep.mubr.bf16.mxu0 0
    %659 = vmatmul.mubr.bf16.gmra.mrb[0].mxu0 %v476
    %v660 = vpop.f32.mrb[0].mxu0
    %v661 = vadd.f32 %v504, %v660
    %v662 = vpop.f32.mrb[0].mxu0
    %v663 = vpop.f32.mrb[0].mxu0
    %v664 = vadd.f32 %v504, %v663
    %v665 = vpop.f32.mrb[0].mxu0
    %666 = vmatprep.mubr.bf16.mxu0 0
    %667 = vmatmul.mubr.bf16.gmra.mrb[0].mxu0 %v477
    %v668 = vpop.f32.mrb[0].mxu0
    %v669 = vadd.f32 %v504, %v668
    %v670 = vpop.f32.mrb[0].mxu0
    %v671 = vpop.f32.mrb[0].mxu0
    %v672 = vadd.f32 %v504, %v671
    %v673 = vpop.f32.mrb[0].mxu0
    %674 = vmatprep.mubr.bf16.mxu0 0
    %675 = vmatmul.mubr.bf16.gmra.mrb[0].mxu0 %v478
    %v676 = vpop.f32.mrb[0].mxu0
    %v677 = vadd.f32 %v504, %v676
    %v678 = vpop.f32.mrb[0].mxu0
    %v679 = vpop.f32.mrb[0].mxu0
    %v680 = vadd.f32 %v504, %v679
    %v681 = vpop.f32.mrb[0].mxu0
    %682 = vmatprep.mubr.bf16.mxu0 0
    %683 = vmatmul.mubr.bf16.gmra.mrb[0].mxu0 %v479
    %v684 = vpop.f32.mrb[0].mxu0
    %v685 = vadd.f32 %v504, %v684
    %v686 = vpop.f32.mrb[0].mxu0
    %v687 = vpop.f32.mrb[0].mxu0
    %v688 = vadd.f32 %v504, %v687
    %v689 = vpop.f32.mrb[0].mxu0
    %690 = vmatprep.mubr.bf16.mxu0 0
    %691 = vmatmul.mubr.bf16.gmra.mrb[0].mxu0 %v480
    %v692 = vpop.f32.mrb[0].mxu0
    %v693 = vadd.f32 %v504, %v692
    %v694 = vpop.f32.mrb[0].mxu0
    %v695 = vpop.f32.mrb[0].mxu0
    %v696 = vadd.f32 %v504, %v695
    %v697 = vpop.f32.mrb[0].mxu0
    %698 = vmatprep.mubr.bf16.mxu0 0
    %699 = vmatmul.mubr.bf16.gmra.mrb[0].mxu0 %v481
    %v700 = vpop.f32.mrb[0].mxu0
    %v701 = vadd.f32 %v504, %v700
    %v702 = vpop.f32.mrb[0].mxu0
    %v703 = vpop.f32.mrb[0].mxu0
    %v704 = vadd.f32 %v504, %v703
    %v705 = vpop.f32.mrb[0].mxu0
    %706 = vmatprep.mubr.bf16.mxu0 0
    %707 = vmatmul.mubr.bf16.gmra.mrb[0].mxu0 %v482
    %v708 = vpop.f32.mrb[0].mxu0
    %v709 = vadd.f32 %v504, %v708
    %v710 = vpop.f32.mrb[0].mxu0
    %v711 = vpop.f32.mrb[0].mxu0
    %v712 = vadd.f32 %v504, %v711
    %v713 = vpop.f32.mrb[0].mxu0
    %714 = vdwg.mxu0
    %v715 = vlaneseq
    %v716 = vshrl.u32 %v715, 7
    %v717 = vadd.s32 %v716, 8
    %v718 = vadd.s32 %v716, 16
    %v719 = vadd.s32 %v716, 24
    %v720 = vadd.s32 %v716, 32
    %v721 = vadd.s32 %v716, 40
    %v722 = vadd.s32 %v716, 48
    %v723 = vadd.s32 %v716, 56
    %v724 = vadd.s32 %v716, 64
    %v725 = vadd.s32 %v716, 72
    %v726 = vadd.s32 %v716, 80
    %v727 = vadd.s32 %v716, 88
    %v728 = vadd.s32 %v716, 96
    %v729 = vadd.s32 %v716, 104
    %v730 = vadd.s32 %v716, 112
    %v731 = vadd.s32 %v716, 120
    %v732 = vadd.s32 %v716, 128
    %v733 = vadd.s32 %v716, 136
    %v734 = vadd.s32 %v716, 144
    %v735 = vadd.s32 %v716, 152
    %v736 = vadd.s32 %v716, 160
    %v737 = vadd.s32 %v716, 168
    %v738 = vadd.s32 %v716, 176
    %v739 = vadd.s32 %v716, 184
    %v740 = vadd.s32 %v716, 192
    %v741 = vadd.s32 %v716, 200
    %v742 = vadd.s32 %v716, 208
    %v743 = vadd.s32 %v716, 216
    %v744 = vadd.s32 %v716, 224
    %v745 = vadd.s32 %v716, 232
    %v746 = vadd.s32 %v716, 240
    %v747 = vadd.s32 %v716, 248
    %s748 = smul.u32 0, 256
    %v749 = vstv %s748
    %v750 = vadd.s32 %v716, %v749
    %v751 = vadd.s32 %v717, %v749
    %v752 = vadd.s32 %v718, %v749
    %v753 = vadd.s32 %v719, %v749
    %v754 = vadd.s32 %v720, %v749
    %v755 = vadd.s32 %v721, %v749
    %v756 = vadd.s32 %v722, %v749
    %v757 = vadd.s32 %v723, %v749
    %v758 = vadd.s32 %v724, %v749
    %v759 = vadd.s32 %v725, %v749
    %v760 = vadd.s32 %v726, %v749
    %v761 = vadd.s32 %v727, %v749
    %v762 = vadd.s32 %v728, %v749
    %v763 = vadd.s32 %v729, %v749
    %v764 = vadd.s32 %v730, %v749
    %v765 = vadd.s32 %v731, %v749
    %v766 = vadd.s32 %v732, %v749
    %v767 = vadd.s32 %v733, %v749
    %v768 = vadd.s32 %v734, %v749
    %v769 = vadd.s32 %v735, %v749
    %v770 = vadd.s32 %v736, %v749
    %v771 = vadd.s32 %v737, %v749
    %v772 = vadd.s32 %v738, %v749
    %v773 = vadd.s32 %v739, %v749
    %v774 = vadd.s32 %v740, %v749
    %v775 = vadd.s32 %v741, %v749
    %v776 = vadd.s32 %v742, %v749
    %v777 = vadd.s32 %v743, %v749
    %v778 = vadd.s32 %v744, %v749
    %v779 = vadd.s32 %v745, %v749
    %v780 = vadd.s32 %v746, %v749
    %v781 = vadd.s32 %v747, %v749
    %s782 = sld [smem:[#allocation6]]
    %v783 = vstv %s782
    %vm784 = vcmp.lt.s32.totalorder %v750, %v783
    %vm785 = vcmp.lt.s32.totalorder %v751, %v783
    %vm786 = vcmp.lt.s32.totalorder %v752, %v783
    %vm787 = vcmp.lt.s32.totalorder %v753, %v783
    %vm788 = vcmp.lt.s32.totalorder %v754, %v783
    %vm789 = vcmp.lt.s32.totalorder %v755, %v783
    %vm790 = vcmp.lt.s32.totalorder %v756, %v783
    %vm791 = vcmp.lt.s32.totalorder %v757, %v783
    %vm792 = vcmp.lt.s32.totalorder %v758, %v783
    %vm793 = vcmp.lt.s32.totalorder %v759, %v783
    %vm794 = vcmp.lt.s32.totalorder %v760, %v783
    %vm795 = vcmp.lt.s32.totalorder %v761, %v783
    %vm796 = vcmp.lt.s32.totalorder %v762, %v783
    %vm797 = vcmp.lt.s32.totalorder %v763, %v783
    %vm798 = vcmp.lt.s32.totalorder %v764, %v783
    %vm799 = vcmp.lt.s32.totalorder %v765, %v783
    %vm800 = vcmp.lt.s32.totalorder %v766, %v783
    %vm801 = vcmp.lt.s32.totalorder %v767, %v783
    %vm802 = vcmp.lt.s32.totalorder %v768, %v783
    %vm803 = vcmp.lt.s32.totalorder %v769, %v783
    %vm804 = vcmp.lt.s32.totalorder %v770, %v783
    %vm805 = vcmp.lt.s32.totalorder %v771, %v783
    %vm806 = vcmp.lt.s32.totalorder %v772, %v783
    %vm807 = vcmp.lt.s32.totalorder %v773, %v783
    %vm808 = vcmp.lt.s32.totalorder %v774, %v783
    %vm809 = vcmp.lt.s32.totalorder %v775, %v783
    %vm810 = vcmp.lt.s32.totalorder %v776, %v783
    %vm811 = vcmp.lt.s32.totalorder %v777, %v783
    %vm812 = vcmp.lt.s32.totalorder %v778, %v783
    %vm813 = vcmp.lt.s32.totalorder %v779, %v783
    %vm814 = vcmp.lt.s32.totalorder %v780, %v783
    %vm815 = vcmp.lt.s32.totalorder %v781, %v783
    %v816 = vsel %vm784, %v589, -1e+30
    %v817 = vsel %vm785, %v592, -1e+30
    %v818 = vsel %vm786, %v597, -1e+30
    %v819 = vsel %vm787, %v600, -1e+30
    %v820 = vsel %vm788, %v605, -1e+30
    %v821 = vsel %vm789, %v608, -1e+30
    %v822 = vsel %vm790, %v613, -1e+30
    %v823 = vsel %vm791, %v616, -1e+30
    %v824 = vsel %vm792, %v621, -1e+30
    %v825 = vsel %vm793, %v624, -1e+30
    %v826 = vsel %vm794, %v629, -1e+30
    %v827 = vsel %vm795, %v632, -1e+30
    %v828 = vsel %vm796, %v637, -1e+30
    %v829 = vsel %vm797, %v640, -1e+30
    %v830 = vsel %vm798, %v645, -1e+30
    %v831 = vsel %vm799, %v648, -1e+30
    %v832 = vsel %vm800, %v653, -1e+30
    %v833 = vsel %vm801, %v656, -1e+30
    %v834 = vsel %vm802, %v661, -1e+30
    %v835 = vsel %vm803, %v664, -1e+30
    %v836 = vsel %vm804, %v669, -1e+30
    %v837 = vsel %vm805, %v672, -1e+30
    %v838 = vsel %vm806, %v677, -1e+30
    %v839 = vsel %vm807, %v680, -1e+30
    %v840 = vsel %vm808, %v685, -1e+30
    %v841 = vsel %vm809, %v688, -1e+30
    %v842 = vsel %vm810, %v693, -1e+30
    %v843 = vsel %vm811, %v696, -1e+30
    %v844 = vsel %vm812, %v701, -1e+30
    %v845 = vsel %vm813, %v704, -1e+30
    %v846 = vsel %vm814, %v709, -1e+30
    %v847 = vsel %vm815, %v712, -1e+30
    %v848 = vld [vmem:[#allocation2] sm:$0x1]
    %v849 = vmax.f32 %v816, %v820
    %v850 = vmax.f32 %v817, %v821
    %v851 = vmax.f32 %v818, %v822
    %v852 = vmax.f32 %v819, %v823
    %v853 = vmax.f32 %v849, %v824
    %v854 = vmax.f32 %v850, %v825
    %v855 = vmax.f32 %v851, %v826
    %v856 = vmax.f32 %v852, %v827
    %v857 = vmax.f32 %v853, %v828
    %v858 = vmax.f32 %v854, %v829
    %v859 = vmax.f32 %v855, %v830
    %v860 = vmax.f32 %v856, %v831
    %v861 = vmax.f32 %v857, %v832
    %v862 = vmax.f32 %v858, %v833
    %v863 = vmax.f32 %v859, %v834
    %v864 = vmax.f32 %v860, %v835
    %v865 = vmax.f32 %v861, %v836
    %v866 = vmax.f32 %v862, %v837
    %v867 = vmax.f32 %v863, %v838
    %v868 = vmax.f32 %v864, %v839
    %v869 = vmax.f32 %v865, %v840
    %v870 = vmax.f32 %v866, %v841
    %v871 = vmax.f32 %v867, %v842
    %v872 = vmax.f32 %v868, %v843
    %v873 = vmax.f32 %v869, %v844
    %v874 = vmax.f32 %v870, %v845
    %v875 = vmax.f32 %v871, %v846
    %v876 = vmax.f32 %v872, %v847
    %v877 = vmax.f32 %v873, %v874
    %v878 = vmax.f32 %v875, %v876
    %v879 = vmax.f32 %v877, %v878
    %v880 = vrot.slane %v879, 4
    %v881 = vmax.f32 %v879, %v880
    %v882 = vrot.slane %v881, 2
    %v883 = vmax.f32 %v881, %v882
    %v884 = vrot.slane %v883, 1
    %v885 = vmax.f32 %v883, %v884
    %v886 = vmax.f32 %v848, %v885
    %v887 = vsub.f32 %v848, %v886
    %v888 = vmul.f32 %v887, 1.442695
    %v889 = vpow.pop %v888
    %v891 = vlaneseq
    %v892 = vshrl.u32 %v891, 7
    %v893 = vsub.s32 0, %v892
    %v894 = vrot.slane %v886, %v893
    %v896 = vsub.f32 %v816, %v894
    %v897 = vsub.f32 %v817, %v894
    %v898 = vsub.f32 %v818, %v894
    %v899 = vsub.f32 %v819, %v894
    %v900 = vsub.f32 %v820, %v894
    %v901 = vsub.f32 %v821, %v894
    %v902 = vsub.f32 %v822, %v894
    %v903 = vsub.f32 %v823, %v894
    %v904 = vsub.f32 %v824, %v894
    %v905 = vsub.f32 %v825, %v894
    %v906 = vsub.f32 %v826, %v894
    %v907 = vsub.f32 %v827, %v894
    %v908 = vsub.f32 %v828, %v894
    %v909 = vsub.f32 %v829, %v894
    %v910 = vsub.f32 %v830, %v894
    %v911 = vsub.f32 %v831, %v894
    %v912 = vsub.f32 %v832, %v894
    %v913 = vsub.f32 %v833, %v894
    %v914 = vsub.f32 %v834, %v894
    %v915 = vsub.f32 %v835, %v894
    %v916 = vsub.f32 %v836, %v894
    %v917 = vsub.f32 %v837, %v894
    %v918 = vsub.f32 %v838, %v894
    %v919 = vsub.f32 %v839, %v894
    %v920 = vsub.f32 %v840, %v894
    %v921 = vsub.f32 %v841, %v894
    %v922 = vsub.f32 %v842, %v894
    %v923 = vsub.f32 %v843, %v894
    %v924 = vsub.f32 %v844, %v894
    %v925 = vsub.f32 %v845, %v894
    %v926 = vsub.f32 %v846, %v894
    %v927 = vsub.f32 %v847, %v894
    %v928 = vmul.f32 %v896, 1.442695
    %v929 = vpow.pop %v928
    %v930 = vmul.f32 %v897, 1.442695
    %v931 = vpow.pop %v930
    %v932 = vmul.f32 %v898, 1.442695
    %v933 = vpow.pop %v932
    %v934 = vmul.f32 %v899, 1.442695
    %v935 = vpow.pop %v934
    %v936 = vmul.f32 %v900, 1.442695
    %v937 = vpow.pop %v936
    %v938 = vmul.f32 %v901, 1.442695
    %v939 = vpow.pop %v938
    %v940 = vmul.f32 %v902, 1.442695
    %v941 = vpow.pop %v940
    %v942 = vmul.f32 %v903, 1.442695
    %v943 = vpow.pop %v942
    %v944 = vmul.f32 %v904, 1.442695
    %v945 = vpow.pop %v944
    %v946 = vmul.f32 %v905, 1.442695
    %v947 = vpow.pop %v946
    %v948 = vmul.f32 %v906, 1.442695
    %v949 = vpow.pop %v948
    %v950 = vmul.f32 %v907, 1.442695
    %v951 = vpow.pop %v950
    %v952 = vmul.f32 %v908, 1.442695
    %v953 = vpow.pop %v952
    %v954 = vmul.f32 %v909, 1.442695
    %v955 = vpow.pop %v954
    %v956 = vmul.f32 %v910, 1.442695
    %v957 = vpow.pop %v956
    %v958 = vmul.f32 %v911, 1.442695
    %v959 = vpow.pop %v958
    %v960 = vmul.f32 %v912, 1.442695
    %v961 = vpow.pop %v960
    %v962 = vmul.f32 %v913, 1.442695
    %v963 = vpow.pop %v962
    %v964 = vmul.f32 %v914, 1.442695
    %v965 = vpow.pop %v964
    %v966 = vmul.f32 %v915, 1.442695
    %v967 = vpow.pop %v966
    %v968 = vmul.f32 %v916, 1.442695
    %v969 = vpow.pop %v968
    %v970 = vmul.f32 %v917, 1.442695
    %v971 = vpow.pop %v970
    %v972 = vmul.f32 %v918, 1.442695
    %v973 = vpow.pop %v972
    %v974 = vmul.f32 %v919, 1.442695
    %v975 = vpow.pop %v974
    %v976 = vmul.f32 %v920, 1.442695
    %v977 = vpow.pop %v976
    %v978 = vmul.f32 %v921, 1.442695
    %v979 = vpow.pop %v978
    %v980 = vmul.f32 %v922, 1.442695
    %v981 = vpow.pop %v980
    %v982 = vmul.f32 %v923, 1.442695
    %v983 = vpow.pop %v982
    %v984 = vmul.f32 %v924, 1.442695
    %v985 = vpow.pop %v984
    %v986 = vmul.f32 %v925, 1.442695
    %v987 = vpow.pop %v986
    %v988 = vmul.f32 %v926, 1.442695
    %v989 = vpow.pop %v988
    %v990 = vmul.f32 %v927, 1.442695
    %v991 = vpow.pop %v990
    %v992 = vld [vmem:[%s1] sm:$0x3]
    %v993 = vlaneseq
    %v994 = vshrl.u32 %v993, 7
    %v995 = vsub.s32 0, %v994
    %v996 = vrot.slane %v992, %v995
    %v997 = vlaneseq
    %v998 = vshrl.u32 %v997, 7
    %v999 = vsub.s32 1, %v998
    %v1000 = vrot.slane %v992, %v999
    %vm1001 = vcmp.eq.s32.totalorder %v716, %v996
    %vm1002 = vcmp.eq.s32.totalorder %v716, %v1000
    %v1003 = vsel %vm1001, 1, 0
    %v1004 = vsel %vm1002, 1, 0
    %v1005 = vcvt.s32.f32 %v1003
    %v1006 = vcvt.s32.f32 %v1004
    %v1007 = vpack.c.bf16 %v1005, %v1005
    %v1008 = vpack.c.bf16 %v1006, %v1006
    %v1009 = vunpack.c.l.bf16 %v75
    %v1010 = vunpack.c.l.bf16 %v76
    %v1011 = vunpack.c.l.bf16 %v77
    %v1012 = vunpack.c.l.bf16 %v78
    %v1013 = vunpack.c.l.bf16 %v79
    %v1014 = vunpack.c.l.bf16 %v80
    %v1015 = vunpack.c.l.bf16 %v81
    %v1016 = vunpack.c.l.bf16 %v82
    %v1017 = vunpack.c.l.bf16 %v83
    %v1018 = vunpack.c.l.bf16 %v84
    %v1019 = vunpack.c.l.bf16 %v85
    %v1020 = vunpack.c.l.bf16 %v86
    %v1021 = vunpack.c.l.bf16 %v87
    %v1022 = vunpack.c.l.bf16 %v88
    %v1023 = vunpack.c.l.bf16 %v89
    %v1024 = vunpack.c.l.bf16 %v90
    %v1025 = vunpack.c.l.bf16 %v91
    %v1026 = vunpack.c.l.bf16 %v92
    %v1027 = vunpack.c.l.bf16 %v93
    %v1028 = vunpack.c.l.bf16 %v94
    %v1029 = vunpack.c.l.bf16 %v95
    %v1030 = vunpack.c.l.bf16 %v96
    %v1031 = vunpack.c.l.bf16 %v97
    %v1032 = vunpack.c.l.bf16 %v98
    %v1033 = vunpack.c.l.bf16 %v99
    %v1034 = vunpack.c.l.bf16 %v100
    %v1035 = vunpack.c.l.bf16 %v101
    %v1036 = vunpack.c.l.bf16 %v102
    %v1037 = vunpack.c.l.bf16 %v103
    %v1038 = vunpack.c.l.bf16 %v104
    %v1039 = vunpack.c.l.bf16 %v105
    %v1040 = vunpack.c.l.bf16 %v106
    %v1041 = vmul.f32 %v929, %v1009
    %v1042 = vmul.f32 %v931, %v1010
    %v1043 = vmul.f32 %v933, %v1011
    %v1044 = vmul.f32 %v935, %v1012
    %v1045 = vmul.f32 %v937, %v1013
    %v1046 = vmul.f32 %v939, %v1014
    %v1047 = vmul.f32 %v941, %v1015
    %v1048 = vmul.f32 %v943, %v1016
    %v1049 = vmul.f32 %v945, %v1017
    %v1050 = vmul.f32 %v947, %v1018
    %v1051 = vmul.f32 %v949, %v1019
    %v1052 = vmul.f32 %v951, %v1020
    %v1053 = vmul.f32 %v953, %v1021
    %v1054 = vmul.f32 %v955, %v1022
    %v1055 = vmul.f32 %v957, %v1023
    %v1056 = vmul.f32 %v959, %v1024
    %v1057 = vmul.f32 %v961, %v1025
    %v1058 = vmul.f32 %v963, %v1026
    %v1059 = vmul.f32 %v965, %v1027
    %v1060 = vmul.f32 %v967, %v1028
    %v1061 = vmul.f32 %v969, %v1029
    %v1062 = vmul.f32 %v971, %v1030
    %v1063 = vmul.f32 %v973, %v1031
    %v1064 = vmul.f32 %v975, %v1032
    %v1065 = vmul.f32 %v977, %v1033
    %v1066 = vmul.f32 %v979, %v1034
    %v1067 = vmul.f32 %v981, %v1035
    %v1068 = vmul.f32 %v983, %v1036
    %v1069 = vmul.f32 %v985, %v1037
    %v1070 = vmul.f32 %v987, %v1038
    %v1071 = vmul.f32 %v989, %v1039
    %v1072 = vmul.f32 %v991, %v1040
    %v1073 = vpack.c.bf16 %v931, %v929
    %v1074 = vpack.c.bf16 %v1042, %v1041
    %v1075 = vpack.c.bf16 %v935, %v933
    %v1076 = vpack.c.bf16 %v1044, %v1043
    %v1077 = vpack.c.bf16 %v939, %v937
    %v1078 = vpack.c.bf16 %v1046, %v1045
    %v1079 = vpack.c.bf16 %v943, %v941
    %v1080 = vpack.c.bf16 %v1048, %v1047
    %v1081 = vpack.c.bf16 %v947, %v945
    %v1082 = vpack.c.bf16 %v1050, %v1049
    %v1083 = vpack.c.bf16 %v951, %v949
    %v1084 = vpack.c.bf16 %v1052, %v1051
    %v1085 = vpack.c.bf16 %v955, %v953
    %v1086 = vpack.c.bf16 %v1054, %v1053
    %v1087 = vpack.c.bf16 %v959, %v957
    %v1088 = vpack.c.bf16 %v1056, %v1055
    %v1089 = vpack.c.bf16 %v963, %v961
    %v1090 = vpack.c.bf16 %v1058, %v1057
    %v1091 = vpack.c.bf16 %v967, %v965
    %v1092 = vpack.c.bf16 %v1060, %v1059
    %v1093 = vpack.c.bf16 %v971, %v969
    %v1094 = vpack.c.bf16 %v1062, %v1061
    %v1095 = vpack.c.bf16 %v975, %v973
    %v1096 = vpack.c.bf16 %v1064, %v1063
    %v1097 = vpack.c.bf16 %v979, %v977
    %v1098 = vpack.c.bf16 %v1066, %v1065
    %v1099 = vpack.c.bf16 %v983, %v981
    %v1100 = vpack.c.bf16 %v1068, %v1067
    %v1101 = vpack.c.bf16 %v987, %v985
    %v1102 = vpack.c.bf16 %v1070, %v1069
    %v1103 = vpack.c.bf16 %v991, %v989
    %v1104 = vpack.c.bf16 %v1072, %v1071
    %1105 = vmatprep.subr.bf16.mxu0 %v1074
    %1106 = vmatpush1.bf16.msra.mxu0 %v1073
    %1107 = vmatprep.subr.bf16.mxu0 %v1076
    %1108 = vmatpush1.bf16.msra.mxu0 %v1075
    %1109 = vmatprep.subr.bf16.mxu0 %v1078
    %1110 = vmatpush1.bf16.msra.mxu0 %v1077
    %1111 = vmatprep.subr.bf16.mxu0 %v1080
    %1112 = vmatpush1.bf16.msra.mxu0 %v1079
    %1113 = vmatprep.subr.bf16.mxu0 %v1082
    %1114 = vmatpush1.bf16.msra.mxu0 %v1081
    %1115 = vmatprep.subr.bf16.mxu0 %v1084
    %1116 = vmatpush1.bf16.msra.mxu0 %v1083
    %1117 = vmatprep.subr.bf16.mxu0 %v1086
    %1118 = vmatpush1.bf16.msra.mxu0 %v1085
    %1119 = vmatprep.subr.bf16.mxu0 %v1088
    %1120 = vmatpush1.bf16.msra.mxu0 %v1087
    %1121 = vmatprep.subr.bf16.mxu0 %v1090
    %1122 = vmatpush1.bf16.msra.mxu0 %v1089
    %1123 = vmatprep.subr.bf16.mxu0 %v1092
    %1124 = vmatpush1.bf16.msra.mxu0 %v1091
    %1125 = vmatprep.subr.bf16.mxu0 %v1094
    %1126 = vmatpush1.bf16.msra.mxu0 %v1093
    %1127 = vmatprep.subr.bf16.mxu0 %v1096
    %1128 = vmatpush1.bf16.msra.mxu0 %v1095
    %1129 = vmatprep.subr.bf16.mxu0 %v1098
    %1130 = vmatpush1.bf16.msra.mxu0 %v1097
    %1131 = vmatprep.subr.bf16.mxu0 %v1100
    %1132 = vmatpush1.bf16.msra.mxu0 %v1099
    %1133 = vmatprep.subr.bf16.mxu0 %v1102
    %1134 = vmatpush1.bf16.msra.mxu0 %v1101
    %1135 = vmatprep.subr.bf16.mxu0 %v1104
    %1136 = vmatpush1.bf16.msra.mxu0 %v1103
    %1137 = vmatprep.mubr.bf16.mxu0 %v1008
    %1138 = vmatmul.mubr.bf16.gmra.mrb[0].mxu0 %v1007
    %v1139 = vpop.f32.mrb[0].mxu0
    %v1140 = vadd.f32 0.0, %v1139
    %v1141 = vpop.f32.mrb[0].mxu0
    %v1142 = vadd.f32 0.0, %v1141
    %v1143 = vpop.f32.mrb[0].mxu0
    %v1144 = vpop.f32.mrb[0].mxu0
    %1145 = vdwg.mxu0
    %v1146 = vld [vmem:[#allocation3] sm:$0xff]
    %v1148 = vlaneseq
    %v1149 = vshrl.u32 %v1148, 7
    %v1150 = vsub.s32 0, %v1149
    %v1151 = vrot.slane %v889, %v1150
    %v1153 = vmul.f32 %v1146, %v1151
    %v1154 = vadd.f32 %v1153, %v1140
    %1155 = vst [vmem:[#allocation3] sm:$0xff] %v1154
    %v1156 = vld [vmem:[#allocation4] sm:$0xff]
    %v1157 = vmul.f32 %v1156, %v1151
    %v1158 = vadd.f32 %v1157, %v1142
    %1159 = vst [vmem:[#allocation4] sm:$0xff] %v1158
    %1160 = vst [vmem:[#allocation2] sm:$0x1] %v886
    // Predicated region
    $region42: #{tpu_custom_call.1} parent=1 // pred_check
      %p1161 = pneg %p68
    $region43: #{tpu_custom_call.1} parent=1 // pred_check_branch
      %1163 = sbr.rel (%p1161) target = $region45
    $region44: #{tpu_custom_call.1} parent=1 // pred_region
      %v1164 = vld [vmem:[#allocation3] sm:$0xff]
      %vm1165 = vcmp.gt.f32.partialorder %v1164, 0.0
      %v1166 = vsel %vm1165, %v1164, 1.0
      %v1167 = vld [vmem:[#allocation4] sm:$0xff]
      %v1168 = vrcp.pop %v1166
      %v1169 = vmul.f32 %v1167, %v1168
      %1170 = vst [vmem:[#allocation13] sm:$0xff] %v1169
    $region45: #{tpu_custom_call.1} parent=1 // pred_fallthru
      _
    // Predicated region
    $region46: #{tpu_custom_call.1} parent=1 // pred_check
      _
    $region47: #{tpu_custom_call.1} parent=1 // pred_check_branch
      %1172 = sbr.rel (0) target = $region49
    $region48: #{tpu_custom_call.1} parent=1 // pred_region
      %s1174 = ssub.s32 128, 128
      %1175 = vsyncadd [#allocation9], %s1174
      %s1177 = sshll.u32 [#allocation13], 4
      %s1178 = int_to_ptr.vmem [resolvable:$true] %s1177
      %1180 = dma.vmem_to_hbm [thread:$0]  %s1178, 128, %s7, [#allocation9]
    $region49: #{tpu_custom_call.1} parent=1 // pred_fallthru
      _
    // Predicated region
    $region50: #{tpu_custom_call.1} parent=1 // pred_check
      _
    $region51: #{tpu_custom_call.1} parent=1 // pred_check_branch
      %1182 = sbr.rel (0) target = $region53
    $region52: #{tpu_custom_call.1} parent=1 // pred_region
      %1183 = dma.done [#allocation9], 128
    $region53: #{tpu_custom_call.1} parent=1 // pred_fallthru
      _
    %1184 = vsyncpa [#allocation8], 1
    %1185 = vsyncpa [#allocation11], 1
    %1186 = vsyncpa [#allocation9], 1

</llo_original>
